<compile_context>
chip_gen: v7x
topology: tpu7x:2x2x1
jax: 0.10.0
libtpu: 0.0.40
codegen_flags: <defaults>
</compile_context>

<pallas_src>
import jax
import jax.numpy as jnp
from jax.experimental import pallas as pl
from jax.experimental.pallas import tpu as pltpu


MAX_ROWS_TILE = 2048   # 2048 rows * 128 lanes = 262,144 batch elems per tile
CHUNK_ROWS = 64        # in-kernel chunk: bounds live intermediates to [64,128]


def _make_kernel(chunk):
    def kernel(x_ref, w1_ref, b1_ref, w2_ref, b2_ref, o_ref):
        """One batch tile, batch on (sublane x lane).

        x_ref  : [2, rows_tile, 128] VMEM  (x0 / x1 reward channels)
        w1_ref : [2*H] SMEM  flattened fc1 weight, w1_ref[2j+i] = W1[j, i]
        b1_ref : [H]   SMEM  fc1 bias
        w2_ref : [H]   SMEM  fc2 weight row
        b2_ref : [1]   SMEM  fc2 bias
        o_ref  : [rows_tile, 128] VMEM output
        """
        rows_tile = o_ref.shape[0]
        hidden = b1_ref.shape[0]
        n_chunks = rows_tile // chunk  # static

        # Hoist all scalar weight reads out of the chunk loop.
        w1v = [w1_ref[k] for k in range(2 * hidden)]
        b1v = [b1_ref[j] for j in range(hidden)]
        w2v = [w2_ref[j] for j in range(hidden)]
        b2v = b2_ref[0]

        @pl.loop(0, n_chunks)
        def _(c):
            r0 = pl.multiple_of(c * chunk, chunk)
            x0 = x_ref[0, pl.ds(r0, chunk), :]            # [chunk, 128]
            x1 = x_ref[1, pl.ds(r0, chunk), :]            # [chunk, 128]
            acc = jnp.full((chunk, 128), b2v, dtype=jnp.float32)
            for j in range(hidden):                        # static unroll (H=32)
                h = x0 * w1v[2 * j] + x1 * w1v[2 * j + 1] + b1v[j]
                acc = acc + jnp.maximum(h, 0.0) * w2v[j]
            o_ref[pl.ds(r0, chunk), :] = acc.astype(o_ref.dtype)

    return kernel


def reward_combiner(rewards, w1, b1, w2, b2):
    """rewards: [B, 2] f32 -> [B, 1] f32 (matches torch RewardCombiner.forward).

    w1: [H, 2] (torch fc1.weight), b1: [H], w2: [H] (torch fc2.weight[0]), b2: [1].
    """
    B, d_in = rewards.shape
    H = w1.shape[0]

    # ---- tile selection: biggest dense tile, no nearly-empty trailing tile ----
    rows_min = pl.cdiv(B, 128)
    if rows_min <= CHUNK_ROWS:
        rows_tile = max(8, ((rows_min + 7) // 8) * 8)
        chunk = rows_tile
        n_tiles = 1
    else:
        n_tiles = pl.cdiv(rows_min, MAX_ROWS_TILE)
        if n_tiles == 1 and rows_min >= 2 * CHUNK_ROWS:
            n_tiles = 2                      # let v7x's 2 TensorCores both work
        rows_tile = ((pl.cdiv(rows_min, n_tiles) + CHUNK_ROWS - 1)
                     // CHUNK_ROWS) * CHUNK_ROWS
        chunk = CHUNK_ROWS
    rows_pad = n_tiles * rows_tile
    b_pad = rows_pad * 128

    # ---- layout prep: [B, 2] -> [2, rows_pad, 128] (batch on sublane x lane) ----
    # TODO(synk): ideally the producer emits rewards already in [2, B] layout so
    # this single transpose/pad pass (extra HBM traffic for a mem-bound kernel)
    # disappears entirely.
    x_dense = jnp.pad(rewards.astype(jnp.float32).T,
                      ((0, 0), (0, b_pad - B))).reshape(d_in, rows_pad, 128)

    out = pl.pallas_call(
        _make_kernel(chunk),
        out_shape=jax.ShapeDtypeStruct((rows_pad, 128), jnp.float32),
        grid_spec=pltpu.PrefetchScalarGridSpec(
            num_scalar_prefetch=0,
            grid=(n_tiles,),
            in_specs=[
                pl.BlockSpec((d_in, rows_tile, 128), lambda i: (0, i, 0)),  # x tile
                pl.BlockSpec(memory_space=pltpu.MemorySpace.SMEM),          # w1 flat
                pl.BlockSpec(memory_space=pltpu.MemorySpace.SMEM),          # b1
                pl.BlockSpec(memory_space=pltpu.MemorySpace.SMEM),          # w2
                pl.BlockSpec(memory_space=pltpu.MemorySpace.SMEM),          # b2
            ],
            out_specs=pl.BlockSpec((rows_tile, 128), lambda i: (i, 0)),
        ),
        compiler_params=pltpu.CompilerParams(
            # Shard batch tiles across both TensorCores on v7x; no-op elsewhere.
            dimension_semantics=("parallel",),
        ),
    )(x_dense,
      w1.astype(jnp.float32).reshape(-1),
      b1.astype(jnp.float32),
      w2.astype(jnp.float32),
      b2.astype(jnp.float32))

    # Flat reshape (no transpose) back to [B, 1]; padded columns are dropped.
    return out.reshape(-1)[:B].reshape(B, 1)


def init_params(key, input_dim=2, hidden_dim=32):
    """Deterministic init mimicking torch.nn.Linear defaults (U[-1/sqrt(fan_in), +])."""
    k1, k2, k3, k4 = jax.random.split(key, 4)
    bound1 = 1.0 / jnp.sqrt(jnp.float32(input_dim))
    bound2 = 1.0 / jnp.sqrt(jnp.float32(hidden_dim))
    w1 = jax.random.uniform(k1, (hidden_dim, input_dim), jnp.float32, -bound1, bound1)
    b1 = jax.random.uniform(k2, (hidden_dim,), jnp.float32, -bound1, bound1)
    w2 = jax.random.uniform(k3, (hidden_dim,), jnp.float32, -bound2, bound2)
    b2 = jax.random.uniform(k4, (1,), jnp.float32, -bound2, bound2)
    return w1, b1, w2, b2


if __name__ == "__main__":
    key = jax.random.PRNGKey(0)
    k_params, k_x = jax.random.split(key)

    input_dim, hidden_dim, batch = 2, 32, 8
    w1, b1, w2, b2 = init_params(k_params, input_dim, hidden_dim)
    rewards = jax.random.normal(k_x, (batch, input_dim), dtype=jnp.float32)

    out = reward_combiner(rewards, w1, b1, w2, b2)
    out = jax.block_until_ready(out)

    # Pure-JAX reference (torch layout: y = relu(x @ W1^T + b1) @ W2^T + b2)
    ref = jnp.maximum(rewards @ w1.T + b1[None, :], 0.0) @ w2[:, None] + b2[0]
    assert out.shape == (batch, 1)
    assert jnp.allclose(out, ref, atol=1e-5, rtol=1e-5)

    print("KERNEL_OK")
</pallas_src>

<mosaic_0001>
module attributes {stable_mosaic.version = 11 : i64} {
  func.func @kernel(%arg0: i32, %arg1: memref<2x8x128xf32, #tpu.memory_space<vmem>>, %arg2: memref<64xf32, #tpu.memory_space<smem>>, %arg3: memref<32xf32, #tpu.memory_space<smem>>, %arg4: memref<32xf32, #tpu.memory_space<smem>>, %arg5: memref<1xf32, #tpu.memory_space<smem>>, %arg6: memref<8x128xf32, #tpu.memory_space<vmem>>) attributes {dimension_semantics = [#tpu.dimension_semantics<parallel>], iteration_bounds = array<i64: 1>, scalar_prefetch = 0 : i64, scratch_operands = 0 : i64, tpu.core_type = #tpu.core_type<tc>, window_params = [{transform_indices = @transform_0, window_bounds = array<i64: 2, 8, 128>}, {transform_indices = @transform_1, window_bounds = array<i64: 64>}, {transform_indices = @transform_2, window_bounds = array<i64: 32>}, {transform_indices = @transform_3, window_bounds = array<i64: 32>}, {transform_indices = @transform_4, window_bounds = array<i64: 1>}, {transform_indices = @transform_5, window_bounds = array<i64: 8, 128>}]} {
    %c0 = arith.constant 0 : index
    %0 = memref.load %arg2[%c0] : memref<64xf32, #tpu.memory_space<smem>>
    %c1 = arith.constant 1 : index
    %1 = memref.load %arg2[%c1] : memref<64xf32, #tpu.memory_space<smem>>
    %c2 = arith.constant 2 : index
    %2 = memref.load %arg2[%c2] : memref<64xf32, #tpu.memory_space<smem>>
    %c3 = arith.constant 3 : index
    %3 = memref.load %arg2[%c3] : memref<64xf32, #tpu.memory_space<smem>>
    %c4 = arith.constant 4 : index
    %4 = memref.load %arg2[%c4] : memref<64xf32, #tpu.memory_space<smem>>
    %c5 = arith.constant 5 : index
    %5 = memref.load %arg2[%c5] : memref<64xf32, #tpu.memory_space<smem>>
    %c6 = arith.constant 6 : index
    %6 = memref.load %arg2[%c6] : memref<64xf32, #tpu.memory_space<smem>>
    %c7 = arith.constant 7 : index
    %7 = memref.load %arg2[%c7] : memref<64xf32, #tpu.memory_space<smem>>
    %c8 = arith.constant 8 : index
    %8 = memref.load %arg2[%c8] : memref<64xf32, #tpu.memory_space<smem>>
    %c9 = arith.constant 9 : index
    %9 = memref.load %arg2[%c9] : memref<64xf32, #tpu.memory_space<smem>>
    %c10 = arith.constant 10 : index
    %10 = memref.load %arg2[%c10] : memref<64xf32, #tpu.memory_space<smem>>
    %c11 = arith.constant 11 : index
    %11 = memref.load %arg2[%c11] : memref<64xf32, #tpu.memory_space<smem>>
    %c12 = arith.constant 12 : index
    %12 = memref.load %arg2[%c12] : memref<64xf32, #tpu.memory_space<smem>>
    %c13 = arith.constant 13 : index
    %13 = memref.load %arg2[%c13] : memref<64xf32, #tpu.memory_space<smem>>
    %c14 = arith.constant 14 : index
    %14 = memref.load %arg2[%c14] : memref<64xf32, #tpu.memory_space<smem>>
    %c15 = arith.constant 15 : index
    %15 = memref.load %arg2[%c15] : memref<64xf32, #tpu.memory_space<smem>>
    %c16 = arith.constant 16 : index
    %16 = memref.load %arg2[%c16] : memref<64xf32, #tpu.memory_space<smem>>
    %c17 = arith.constant 17 : index
    %17 = memref.load %arg2[%c17] : memref<64xf32, #tpu.memory_space<smem>>
    %c18 = arith.constant 18 : index
    %18 = memref.load %arg2[%c18] : memref<64xf32, #tpu.memory_space<smem>>
    %c19 = arith.constant 19 : index
    %19 = memref.load %arg2[%c19] : memref<64xf32, #tpu.memory_space<smem>>
    %c20 = arith.constant 20 : index
    %20 = memref.load %arg2[%c20] : memref<64xf32, #tpu.memory_space<smem>>
    %c21 = arith.constant 21 : index
    %21 = memref.load %arg2[%c21] : memref<64xf32, #tpu.memory_space<smem>>
    %c22 = arith.constant 22 : index
    %22 = memref.load %arg2[%c22] : memref<64xf32, #tpu.memory_space<smem>>
    %c23 = arith.constant 23 : index
    %23 = memref.load %arg2[%c23] : memref<64xf32, #tpu.memory_space<smem>>
    %c24 = arith.constant 24 : index
    %24 = memref.load %arg2[%c24] : memref<64xf32, #tpu.memory_space<smem>>
    %c25 = arith.constant 25 : index
    %25 = memref.load %arg2[%c25] : memref<64xf32, #tpu.memory_space<smem>>
    %c26 = arith.constant 26 : index
    %26 = memref.load %arg2[%c26] : memref<64xf32, #tpu.memory_space<smem>>
    %c27 = arith.constant 27 : index
    %27 = memref.load %arg2[%c27] : memref<64xf32, #tpu.memory_space<smem>>
    %c28 = arith.constant 28 : index
    %28 = memref.load %arg2[%c28] : memref<64xf32, #tpu.memory_space<smem>>
    %c29 = arith.constant 29 : index
    %29 = memref.load %arg2[%c29] : memref<64xf32, #tpu.memory_space<smem>>
    %c30 = arith.constant 30 : index
    %30 = memref.load %arg2[%c30] : memref<64xf32, #tpu.memory_space<smem>>
    %c31 = arith.constant 31 : index
    %31 = memref.load %arg2[%c31] : memref<64xf32, #tpu.memory_space<smem>>
    %c32 = arith.constant 32 : index
    %32 = memref.load %arg2[%c32] : memref<64xf32, #tpu.memory_space<smem>>
    %c33 = arith.constant 33 : index
    %33 = memref.load %arg2[%c33] : memref<64xf32, #tpu.memory_space<smem>>
    %c34 = arith.constant 34 : index
    %34 = memref.load %arg2[%c34] : memref<64xf32, #tpu.memory_space<smem>>
    %c35 = arith.constant 35 : index
    %35 = memref.load %arg2[%c35] : memref<64xf32, #tpu.memory_space<smem>>
    %c36 = arith.constant 36 : index
    %36 = memref.load %arg2[%c36] : memref<64xf32, #tpu.memory_space<smem>>
    %c37 = arith.constant 37 : index
    %37 = memref.load %arg2[%c37] : memref<64xf32, #tpu.memory_space<smem>>
    %c38 = arith.constant 38 : index
    %38 = memref.load %arg2[%c38] : memref<64xf32, #tpu.memory_space<smem>>
    %c39 = arith.constant 39 : index
    %39 = memref.load %arg2[%c39] : memref<64xf32, #tpu.memory_space<smem>>
    %c40 = arith.constant 40 : index
    %40 = memref.load %arg2[%c40] : memref<64xf32, #tpu.memory_space<smem>>
    %c41 = arith.constant 41 : index
    %41 = memref.load %arg2[%c41] : memref<64xf32, #tpu.memory_space<smem>>
    %c42 = arith.constant 42 : index
    %42 = memref.load %arg2[%c42] : memref<64xf32, #tpu.memory_space<smem>>
    %c43 = arith.constant 43 : index
    %43 = memref.load %arg2[%c43] : memref<64xf32, #tpu.memory_space<smem>>
    %c44 = arith.constant 44 : index
    %44 = memref.load %arg2[%c44] : memref<64xf32, #tpu.memory_space<smem>>
    %c45 = arith.constant 45 : index
    %45 = memref.load %arg2[%c45] : memref<64xf32, #tpu.memory_space<smem>>
    %c46 = arith.constant 46 : index
    %46 = memref.load %arg2[%c46] : memref<64xf32, #tpu.memory_space<smem>>
    %c47 = arith.constant 47 : index
    %47 = memref.load %arg2[%c47] : memref<64xf32, #tpu.memory_space<smem>>
    %c48 = arith.constant 48 : index
    %48 = memref.load %arg2[%c48] : memref<64xf32, #tpu.memory_space<smem>>
    %c49 = arith.constant 49 : index
    %49 = memref.load %arg2[%c49] : memref<64xf32, #tpu.memory_space<smem>>
    %c50 = arith.constant 50 : index
    %50 = memref.load %arg2[%c50] : memref<64xf32, #tpu.memory_space<smem>>
    %c51 = arith.constant 51 : index
    %51 = memref.load %arg2[%c51] : memref<64xf32, #tpu.memory_space<smem>>
    %c52 = arith.constant 52 : index
    %52 = memref.load %arg2[%c52] : memref<64xf32, #tpu.memory_space<smem>>
    %c53 = arith.constant 53 : index
    %53 = memref.load %arg2[%c53] : memref<64xf32, #tpu.memory_space<smem>>
    %c54 = arith.constant 54 : index
    %54 = memref.load %arg2[%c54] : memref<64xf32, #tpu.memory_space<smem>>
    %c55 = arith.constant 55 : index
    %55 = memref.load %arg2[%c55] : memref<64xf32, #tpu.memory_space<smem>>
    %c56 = arith.constant 56 : index
    %56 = memref.load %arg2[%c56] : memref<64xf32, #tpu.memory_space<smem>>
    %c57 = arith.constant 57 : index
    %57 = memref.load %arg2[%c57] : memref<64xf32, #tpu.memory_space<smem>>
    %c58 = arith.constant 58 : index
    %58 = memref.load %arg2[%c58] : memref<64xf32, #tpu.memory_space<smem>>
    %c59 = arith.constant 59 : index
    %59 = memref.load %arg2[%c59] : memref<64xf32, #tpu.memory_space<smem>>
    %c60 = arith.constant 60 : index
    %60 = memref.load %arg2[%c60] : memref<64xf32, #tpu.memory_space<smem>>
    %c61 = arith.constant 61 : index
    %61 = memref.load %arg2[%c61] : memref<64xf32, #tpu.memory_space<smem>>
    %c62 = arith.constant 62 : index
    %62 = memref.load %arg2[%c62] : memref<64xf32, #tpu.memory_space<smem>>
    %c63 = arith.constant 63 : index
    %63 = memref.load %arg2[%c63] : memref<64xf32, #tpu.memory_space<smem>>
    %c0_0 = arith.constant 0 : index
    %64 = memref.load %arg3[%c0_0] : memref<32xf32, #tpu.memory_space<smem>>
    %c1_1 = arith.constant 1 : index
    %65 = memref.load %arg3[%c1_1] : memref<32xf32, #tpu.memory_space<smem>>
    %c2_2 = arith.constant 2 : index
    %66 = memref.load %arg3[%c2_2] : memref<32xf32, #tpu.memory_space<smem>>
    %c3_3 = arith.constant 3 : index
    %67 = memref.load %arg3[%c3_3] : memref<32xf32, #tpu.memory_space<smem>>
    %c4_4 = arith.constant 4 : index
    %68 = memref.load %arg3[%c4_4] : memref<32xf32, #tpu.memory_space<smem>>
    %c5_5 = arith.constant 5 : index
    %69 = memref.load %arg3[%c5_5] : memref<32xf32, #tpu.memory_space<smem>>
    %c6_6 = arith.constant 6 : index
    %70 = memref.load %arg3[%c6_6] : memref<32xf32, #tpu.memory_space<smem>>
    %c7_7 = arith.constant 7 : index
    %71 = memref.load %arg3[%c7_7] : memref<32xf32, #tpu.memory_space<smem>>
    %c8_8 = arith.constant 8 : index
    %72 = memref.load %arg3[%c8_8] : memref<32xf32, #tpu.memory_space<smem>>
    %c9_9 = arith.constant 9 : index
    %73 = memref.load %arg3[%c9_9] : memref<32xf32, #tpu.memory_space<smem>>
    %c10_10 = arith.constant 10 : index
    %74 = memref.load %arg3[%c10_10] : memref<32xf32, #tpu.memory_space<smem>>
    %c11_11 = arith.constant 11 : index
    %75 = memref.load %arg3[%c11_11] : memref<32xf32, #tpu.memory_space<smem>>
    %c12_12 = arith.constant 12 : index
    %76 = memref.load %arg3[%c12_12] : memref<32xf32, #tpu.memory_space<smem>>
    %c13_13 = arith.constant 13 : index
    %77 = memref.load %arg3[%c13_13] : memref<32xf32, #tpu.memory_space<smem>>
    %c14_14 = arith.constant 14 : index
    %78 = memref.load %arg3[%c14_14] : memref<32xf32, #tpu.memory_space<smem>>
    %c15_15 = arith.constant 15 : index
    %79 = memref.load %arg3[%c15_15] : memref<32xf32, #tpu.memory_space<smem>>
    %c16_16 = arith.constant 16 : index
    %80 = memref.load %arg3[%c16_16] : memref<32xf32, #tpu.memory_space<smem>>
    %c17_17 = arith.constant 17 : index
    %81 = memref.load %arg3[%c17_17] : memref<32xf32, #tpu.memory_space<smem>>
    %c18_18 = arith.constant 18 : index
    %82 = memref.load %arg3[%c18_18] : memref<32xf32, #tpu.memory_space<smem>>
    %c19_19 = arith.constant 19 : index
    %83 = memref.load %arg3[%c19_19] : memref<32xf32, #tpu.memory_space<smem>>
    %c20_20 = arith.constant 20 : index
    %84 = memref.load %arg3[%c20_20] : memref<32xf32, #tpu.memory_space<smem>>
    %c21_21 = arith.constant 21 : index
    %85 = memref.load %arg3[%c21_21] : memref<32xf32, #tpu.memory_space<smem>>
    %c22_22 = arith.constant 22 : index
    %86 = memref.load %arg3[%c22_22] : memref<32xf32, #tpu.memory_space<smem>>
    %c23_23 = arith.constant 23 : index
    %87 = memref.load %arg3[%c23_23] : memref<32xf32, #tpu.memory_space<smem>>
    %c24_24 = arith.constant 24 : index
    %88 = memref.load %arg3[%c24_24] : memref<32xf32, #tpu.memory_space<smem>>
    %c25_25 = arith.constant 25 : index
    %89 = memref.load %arg3[%c25_25] : memref<32xf32, #tpu.memory_space<smem>>
    %c26_26 = arith.constant 26 : index
    %90 = memref.load %arg3[%c26_26] : memref<32xf32, #tpu.memory_space<smem>>
    %c27_27 = arith.constant 27 : index
    %91 = memref.load %arg3[%c27_27] : memref<32xf32, #tpu.memory_space<smem>>
    %c28_28 = arith.constant 28 : index
    %92 = memref.load %arg3[%c28_28] : memref<32xf32, #tpu.memory_space<smem>>
    %c29_29 = arith.constant 29 : index
    %93 = memref.load %arg3[%c29_29] : memref<32xf32, #tpu.memory_space<smem>>
    %c30_30 = arith.constant 30 : index
    %94 = memref.load %arg3[%c30_30] : memref<32xf32, #tpu.memory_space<smem>>
    %c31_31 = arith.constant 31 : index
    %95 = memref.load %arg3[%c31_31] : memref<32xf32, #tpu.memory_space<smem>>
    %c0_32 = arith.constant 0 : index
    %96 = memref.load %arg4[%c0_32] : memref<32xf32, #tpu.memory_space<smem>>
    %c1_33 = arith.constant 1 : index
    %97 = memref.load %arg4[%c1_33] : memref<32xf32, #tpu.memory_space<smem>>
    %c2_34 = arith.constant 2 : index
    %98 = memref.load %arg4[%c2_34] : memref<32xf32, #tpu.memory_space<smem>>
    %c3_35 = arith.constant 3 : index
    %99 = memref.load %arg4[%c3_35] : memref<32xf32, #tpu.memory_space<smem>>
    %c4_36 = arith.constant 4 : index
    %100 = memref.load %arg4[%c4_36] : memref<32xf32, #tpu.memory_space<smem>>
    %c5_37 = arith.constant 5 : index
    %101 = memref.load %arg4[%c5_37] : memref<32xf32, #tpu.memory_space<smem>>
    %c6_38 = arith.constant 6 : index
    %102 = memref.load %arg4[%c6_38] : memref<32xf32, #tpu.memory_space<smem>>
    %c7_39 = arith.constant 7 : index
    %103 = memref.load %arg4[%c7_39] : memref<32xf32, #tpu.memory_space<smem>>
    %c8_40 = arith.constant 8 : index
    %104 = memref.load %arg4[%c8_40] : memref<32xf32, #tpu.memory_space<smem>>
    %c9_41 = arith.constant 9 : index
    %105 = memref.load %arg4[%c9_41] : memref<32xf32, #tpu.memory_space<smem>>
    %c10_42 = arith.constant 10 : index
    %106 = memref.load %arg4[%c10_42] : memref<32xf32, #tpu.memory_space<smem>>
    %c11_43 = arith.constant 11 : index
    %107 = memref.load %arg4[%c11_43] : memref<32xf32, #tpu.memory_space<smem>>
    %c12_44 = arith.constant 12 : index
    %108 = memref.load %arg4[%c12_44] : memref<32xf32, #tpu.memory_space<smem>>
    %c13_45 = arith.constant 13 : index
    %109 = memref.load %arg4[%c13_45] : memref<32xf32, #tpu.memory_space<smem>>
    %c14_46 = arith.constant 14 : index
    %110 = memref.load %arg4[%c14_46] : memref<32xf32, #tpu.memory_space<smem>>
    %c15_47 = arith.constant 15 : index
    %111 = memref.load %arg4[%c15_47] : memref<32xf32, #tpu.memory_space<smem>>
    %c16_48 = arith.constant 16 : index
    %112 = memref.load %arg4[%c16_48] : memref<32xf32, #tpu.memory_space<smem>>
    %c17_49 = arith.constant 17 : index
    %113 = memref.load %arg4[%c17_49] : memref<32xf32, #tpu.memory_space<smem>>
    %c18_50 = arith.constant 18 : index
    %114 = memref.load %arg4[%c18_50] : memref<32xf32, #tpu.memory_space<smem>>
    %c19_51 = arith.constant 19 : index
    %115 = memref.load %arg4[%c19_51] : memref<32xf32, #tpu.memory_space<smem>>
    %c20_52 = arith.constant 20 : index
    %116 = memref.load %arg4[%c20_52] : memref<32xf32, #tpu.memory_space<smem>>
    %c21_53 = arith.constant 21 : index
    %117 = memref.load %arg4[%c21_53] : memref<32xf32, #tpu.memory_space<smem>>
    %c22_54 = arith.constant 22 : index
    %118 = memref.load %arg4[%c22_54] : memref<32xf32, #tpu.memory_space<smem>>
    %c23_55 = arith.constant 23 : index
    %119 = memref.load %arg4[%c23_55] : memref<32xf32, #tpu.memory_space<smem>>
    %c24_56 = arith.constant 24 : index
    %120 = memref.load %arg4[%c24_56] : memref<32xf32, #tpu.memory_space<smem>>
    %c25_57 = arith.constant 25 : index
    %121 = memref.load %arg4[%c25_57] : memref<32xf32, #tpu.memory_space<smem>>
    %c26_58 = arith.constant 26 : index
    %122 = memref.load %arg4[%c26_58] : memref<32xf32, #tpu.memory_space<smem>>
    %c27_59 = arith.constant 27 : index
    %123 = memref.load %arg4[%c27_59] : memref<32xf32, #tpu.memory_space<smem>>
    %c28_60 = arith.constant 28 : index
    %124 = memref.load %arg4[%c28_60] : memref<32xf32, #tpu.memory_space<smem>>
    %c29_61 = arith.constant 29 : index
    %125 = memref.load %arg4[%c29_61] : memref<32xf32, #tpu.memory_space<smem>>
    %c30_62 = arith.constant 30 : index
    %126 = memref.load %arg4[%c30_62] : memref<32xf32, #tpu.memory_space<smem>>
    %c31_63 = arith.constant 31 : index
    %127 = memref.load %arg4[%c31_63] : memref<32xf32, #tpu.memory_space<smem>>
    %c0_64 = arith.constant 0 : index
    %128 = memref.load %arg5[%c0_64] : memref<1xf32, #tpu.memory_space<smem>>
    %c0_i32 = arith.constant 0 : i32
    %c1_i32 = arith.constant 1 : i32
    %129 = arith.muli %c0_i32, %c1_i32 : i32
    %c0_i32_65 = arith.constant 0 : i32
    %130 = arith.addi %c0_i32_65, %129 : i32
    %c8_i32 = arith.constant 8 : i32
    %131 = arith.muli %130, %c8_i32 : i32
    %132 = tpu.assume_multiple %131, 8 : i32
    %c0_66 = arith.constant 0 : index
    %133 = arith.index_cast %132 : i32 to index
    %c0_67 = arith.constant 0 : index
    %134 = vector.load %arg1[%c0_66, %133, %c0_67] : memref<2x8x128xf32, #tpu.memory_space<vmem>>, vector<1x8x128xf32>
    %135 = vector.shape_cast %134 : vector<1x8x128xf32> to vector<8x128xf32>
    %c1_68 = arith.constant 1 : index
    %136 = arith.index_cast %132 : i32 to index
    %c0_69 = arith.constant 0 : index
    %137 = vector.load %arg1[%c1_68, %136, %c0_69] : memref<2x8x128xf32, #tpu.memory_space<vmem>>, vector<1x8x128xf32>
    %138 = vector.shape_cast %137 : vector<1x8x128xf32> to vector<8x128xf32>
    %139 = vector.broadcast %128 : f32 to vector<8x128xf32>
    %140 = vector.broadcast %0 : f32 to vector<8x128xf32>
    %141 = arith.mulf %135, %140 : vector<8x128xf32>
    %142 = vector.broadcast %1 : f32 to vector<8x128xf32>
    %143 = arith.mulf %138, %142 : vector<8x128xf32>
    %144 = arith.addf %141, %143 : vector<8x128xf32>
    %145 = vector.broadcast %64 : f32 to vector<8x128xf32>
    %146 = arith.addf %144, %145 : vector<8x128xf32>
    %cst = arith.constant 0.000000e+00 : f32
    %147 = vector.broadcast %cst : f32 to vector<8x128xf32>
    %148 = arith.maximumf %146, %147 : vector<8x128xf32>
    %149 = vector.broadcast %96 : f32 to vector<8x128xf32>
    %150 = arith.mulf %148, %149 : vector<8x128xf32>
    %151 = arith.addf %139, %150 : vector<8x128xf32>
    %152 = vector.broadcast %2 : f32 to vector<8x128xf32>
    %153 = arith.mulf %135, %152 : vector<8x128xf32>
    %154 = vector.broadcast %3 : f32 to vector<8x128xf32>
    %155 = arith.mulf %138, %154 : vector<8x128xf32>
    %156 = arith.addf %153, %155 : vector<8x128xf32>
    %157 = vector.broadcast %65 : f32 to vector<8x128xf32>
    %158 = arith.addf %156, %157 : vector<8x128xf32>
    %cst_70 = arith.constant 0.000000e+00 : f32
    %159 = vector.broadcast %cst_70 : f32 to vector<8x128xf32>
    %160 = arith.maximumf %158, %159 : vector<8x128xf32>
    %161 = vector.broadcast %97 : f32 to vector<8x128xf32>
    %162 = arith.mulf %160, %161 : vector<8x128xf32>
    %163 = arith.addf %151, %162 : vector<8x128xf32>
    %164 = vector.broadcast %4 : f32 to vector<8x128xf32>
    %165 = arith.mulf %135, %164 : vector<8x128xf32>
    %166 = vector.broadcast %5 : f32 to vector<8x128xf32>
    %167 = arith.mulf %138, %166 : vector<8x128xf32>
    %168 = arith.addf %165, %167 : vector<8x128xf32>
    %169 = vector.broadcast %66 : f32 to vector<8x128xf32>
    %170 = arith.addf %168, %169 : vector<8x128xf32>
    %cst_71 = arith.constant 0.000000e+00 : f32
    %171 = vector.broadcast %cst_71 : f32 to vector<8x128xf32>
    %172 = arith.maximumf %170, %171 : vector<8x128xf32>
    %173 = vector.broadcast %98 : f32 to vector<8x128xf32>
    %174 = arith.mulf %172, %173 : vector<8x128xf32>
    %175 = arith.addf %163, %174 : vector<8x128xf32>
    %176 = vector.broadcast %6 : f32 to vector<8x128xf32>
    %177 = arith.mulf %135, %176 : vector<8x128xf32>
    %178 = vector.broadcast %7 : f32 to vector<8x128xf32>
    %179 = arith.mulf %138, %178 : vector<8x128xf32>
    %180 = arith.addf %177, %179 : vector<8x128xf32>
    %181 = vector.broadcast %67 : f32 to vector<8x128xf32>
    %182 = arith.addf %180, %181 : vector<8x128xf32>
    %cst_72 = arith.constant 0.000000e+00 : f32
    %183 = vector.broadcast %cst_72 : f32 to vector<8x128xf32>
    %184 = arith.maximumf %182, %183 : vector<8x128xf32>
    %185 = vector.broadcast %99 : f32 to vector<8x128xf32>
    %186 = arith.mulf %184, %185 : vector<8x128xf32>
    %187 = arith.addf %175, %186 : vector<8x128xf32>
    %188 = vector.broadcast %8 : f32 to vector<8x128xf32>
    %189 = arith.mulf %135, %188 : vector<8x128xf32>
    %190 = vector.broadcast %9 : f32 to vector<8x128xf32>
    %191 = arith.mulf %138, %190 : vector<8x128xf32>
    %192 = arith.addf %189, %191 : vector<8x128xf32>
    %193 = vector.broadcast %68 : f32 to vector<8x128xf32>
    %194 = arith.addf %192, %193 : vector<8x128xf32>
    %cst_73 = arith.constant 0.000000e+00 : f32
    %195 = vector.broadcast %cst_73 : f32 to vector<8x128xf32>
    %196 = arith.maximumf %194, %195 : vector<8x128xf32>
    %197 = vector.broadcast %100 : f32 to vector<8x128xf32>
    %198 = arith.mulf %196, %197 : vector<8x128xf32>
    %199 = arith.addf %187, %198 : vector<8x128xf32>
    %200 = vector.broadcast %10 : f32 to vector<8x128xf32>
    %201 = arith.mulf %135, %200 : vector<8x128xf32>
    %202 = vector.broadcast %11 : f32 to vector<8x128xf32>
    %203 = arith.mulf %138, %202 : vector<8x128xf32>
    %204 = arith.addf %201, %203 : vector<8x128xf32>
    %205 = vector.broadcast %69 : f32 to vector<8x128xf32>
    %206 = arith.addf %204, %205 : vector<8x128xf32>
    %cst_74 = arith.constant 0.000000e+00 : f32
    %207 = vector.broadcast %cst_74 : f32 to vector<8x128xf32>
    %208 = arith.maximumf %206, %207 : vector<8x128xf32>
    %209 = vector.broadcast %101 : f32 to vector<8x128xf32>
    %210 = arith.mulf %208, %209 : vector<8x128xf32>
    %211 = arith.addf %199, %210 : vector<8x128xf32>
    %212 = vector.broadcast %12 : f32 to vector<8x128xf32>
    %213 = arith.mulf %135, %212 : vector<8x128xf32>
    %214 = vector.broadcast %13 : f32 to vector<8x128xf32>
    %215 = arith.mulf %138, %214 : vector<8x128xf32>
    %216 = arith.addf %213, %215 : vector<8x128xf32>
    %217 = vector.broadcast %70 : f32 to vector<8x128xf32>
    %218 = arith.addf %216, %217 : vector<8x128xf32>
    %cst_75 = arith.constant 0.000000e+00 : f32
    %219 = vector.broadcast %cst_75 : f32 to vector<8x128xf32>
    %220 = arith.maximumf %218, %219 : vector<8x128xf32>
    %221 = vector.broadcast %102 : f32 to vector<8x128xf32>
    %222 = arith.mulf %220, %221 : vector<8x128xf32>
    %223 = arith.addf %211, %222 : vector<8x128xf32>
    %224 = vector.broadcast %14 : f32 to vector<8x128xf32>
    %225 = arith.mulf %135, %224 : vector<8x128xf32>
    %226 = vector.broadcast %15 : f32 to vector<8x128xf32>
    %227 = arith.mulf %138, %226 : vector<8x128xf32>
    %228 = arith.addf %225, %227 : vector<8x128xf32>
    %229 = vector.broadcast %71 : f32 to vector<8x128xf32>
    %230 = arith.addf %228, %229 : vector<8x128xf32>
    %cst_76 = arith.constant 0.000000e+00 : f32
    %231 = vector.broadcast %cst_76 : f32 to vector<8x128xf32>
    %232 = arith.maximumf %230, %231 : vector<8x128xf32>
    %233 = vector.broadcast %103 : f32 to vector<8x128xf32>
    %234 = arith.mulf %232, %233 : vector<8x128xf32>
    %235 = arith.addf %223, %234 : vector<8x128xf32>
    %236 = vector.broadcast %16 : f32 to vector<8x128xf32>
    %237 = arith.mulf %135, %236 : vector<8x128xf32>
    %238 = vector.broadcast %17 : f32 to vector<8x128xf32>
    %239 = arith.mulf %138, %238 : vector<8x128xf32>
    %240 = arith.addf %237, %239 : vector<8x128xf32>
    %241 = vector.broadcast %72 : f32 to vector<8x128xf32>
    %242 = arith.addf %240, %241 : vector<8x128xf32>
    %cst_77 = arith.constant 0.000000e+00 : f32
    %243 = vector.broadcast %cst_77 : f32 to vector<8x128xf32>
    %244 = arith.maximumf %242, %243 : vector<8x128xf32>
    %245 = vector.broadcast %104 : f32 to vector<8x128xf32>
    %246 = arith.mulf %244, %245 : vector<8x128xf32>
    %247 = arith.addf %235, %246 : vector<8x128xf32>
    %248 = vector.broadcast %18 : f32 to vector<8x128xf32>
    %249 = arith.mulf %135, %248 : vector<8x128xf32>
    %250 = vector.broadcast %19 : f32 to vector<8x128xf32>
    %251 = arith.mulf %138, %250 : vector<8x128xf32>
    %252 = arith.addf %249, %251 : vector<8x128xf32>
    %253 = vector.broadcast %73 : f32 to vector<8x128xf32>
    %254 = arith.addf %252, %253 : vector<8x128xf32>
    %cst_78 = arith.constant 0.000000e+00 : f32
    %255 = vector.broadcast %cst_78 : f32 to vector<8x128xf32>
    %256 = arith.maximumf %254, %255 : vector<8x128xf32>
    %257 = vector.broadcast %105 : f32 to vector<8x128xf32>
    %258 = arith.mulf %256, %257 : vector<8x128xf32>
    %259 = arith.addf %247, %258 : vector<8x128xf32>
    %260 = vector.broadcast %20 : f32 to vector<8x128xf32>
    %261 = arith.mulf %135, %260 : vector<8x128xf32>
    %262 = vector.broadcast %21 : f32 to vector<8x128xf32>
    %263 = arith.mulf %138, %262 : vector<8x128xf32>
    %264 = arith.addf %261, %263 : vector<8x128xf32>
    %265 = vector.broadcast %74 : f32 to vector<8x128xf32>
    %266 = arith.addf %264, %265 : vector<8x128xf32>
    %cst_79 = arith.constant 0.000000e+00 : f32
    %267 = vector.broadcast %cst_79 : f32 to vector<8x128xf32>
    %268 = arith.maximumf %266, %267 : vector<8x128xf32>
    %269 = vector.broadcast %106 : f32 to vector<8x128xf32>
    %270 = arith.mulf %268, %269 : vector<8x128xf32>
    %271 = arith.addf %259, %270 : vector<8x128xf32>
    %272 = vector.broadcast %22 : f32 to vector<8x128xf32>
    %273 = arith.mulf %135, %272 : vector<8x128xf32>
    %274 = vector.broadcast %23 : f32 to vector<8x128xf32>
    %275 = arith.mulf %138, %274 : vector<8x128xf32>
    %276 = arith.addf %273, %275 : vector<8x128xf32>
    %277 = vector.broadcast %75 : f32 to vector<8x128xf32>
    %278 = arith.addf %276, %277 : vector<8x128xf32>
    %cst_80 = arith.constant 0.000000e+00 : f32
    %279 = vector.broadcast %cst_80 : f32 to vector<8x128xf32>
    %280 = arith.maximumf %278, %279 : vector<8x128xf32>
    %281 = vector.broadcast %107 : f32 to vector<8x128xf32>
    %282 = arith.mulf %280, %281 : vector<8x128xf32>
    %283 = arith.addf %271, %282 : vector<8x128xf32>
    %284 = vector.broadcast %24 : f32 to vector<8x128xf32>
    %285 = arith.mulf %135, %284 : vector<8x128xf32>
    %286 = vector.broadcast %25 : f32 to vector<8x128xf32>
    %287 = arith.mulf %138, %286 : vector<8x128xf32>
    %288 = arith.addf %285, %287 : vector<8x128xf32>
    %289 = vector.broadcast %76 : f32 to vector<8x128xf32>
    %290 = arith.addf %288, %289 : vector<8x128xf32>
    %cst_81 = arith.constant 0.000000e+00 : f32
    %291 = vector.broadcast %cst_81 : f32 to vector<8x128xf32>
    %292 = arith.maximumf %290, %291 : vector<8x128xf32>
    %293 = vector.broadcast %108 : f32 to vector<8x128xf32>
    %294 = arith.mulf %292, %293 : vector<8x128xf32>
    %295 = arith.addf %283, %294 : vector<8x128xf32>
    %296 = vector.broadcast %26 : f32 to vector<8x128xf32>
    %297 = arith.mulf %135, %296 : vector<8x128xf32>
    %298 = vector.broadcast %27 : f32 to vector<8x128xf32>
    %299 = arith.mulf %138, %298 : vector<8x128xf32>
    %300 = arith.addf %297, %299 : vector<8x128xf32>
    %301 = vector.broadcast %77 : f32 to vector<8x128xf32>
    %302 = arith.addf %300, %301 : vector<8x128xf32>
    %cst_82 = arith.constant 0.000000e+00 : f32
    %303 = vector.broadcast %cst_82 : f32 to vector<8x128xf32>
    %304 = arith.maximumf %302, %303 : vector<8x128xf32>
    %305 = vector.broadcast %109 : f32 to vector<8x128xf32>
    %306 = arith.mulf %304, %305 : vector<8x128xf32>
    %307 = arith.addf %295, %306 : vector<8x128xf32>
    %308 = vector.broadcast %28 : f32 to vector<8x128xf32>
    %309 = arith.mulf %135, %308 : vector<8x128xf32>
    %310 = vector.broadcast %29 : f32 to vector<8x128xf32>
    %311 = arith.mulf %138, %310 : vector<8x128xf32>
    %312 = arith.addf %309, %311 : vector<8x128xf32>
    %313 = vector.broadcast %78 : f32 to vector<8x128xf32>
    %314 = arith.addf %312, %313 : vector<8x128xf32>
    %cst_83 = arith.constant 0.000000e+00 : f32
    %315 = vector.broadcast %cst_83 : f32 to vector<8x128xf32>
    %316 = arith.maximumf %314, %315 : vector<8x128xf32>
    %317 = vector.broadcast %110 : f32 to vector<8x128xf32>
    %318 = arith.mulf %316, %317 : vector<8x128xf32>
    %319 = arith.addf %307, %318 : vector<8x128xf32>
    %320 = vector.broadcast %30 : f32 to vector<8x128xf32>
    %321 = arith.mulf %135, %320 : vector<8x128xf32>
    %322 = vector.broadcast %31 : f32 to vector<8x128xf32>
    %323 = arith.mulf %138, %322 : vector<8x128xf32>
    %324 = arith.addf %321, %323 : vector<8x128xf32>
    %325 = vector.broadcast %79 : f32 to vector<8x128xf32>
    %326 = arith.addf %324, %325 : vector<8x128xf32>
    %cst_84 = arith.constant 0.000000e+00 : f32
    %327 = vector.broadcast %cst_84 : f32 to vector<8x128xf32>
    %328 = arith.maximumf %326, %327 : vector<8x128xf32>
    %329 = vector.broadcast %111 : f32 to vector<8x128xf32>
    %330 = arith.mulf %328, %329 : vector<8x128xf32>
    %331 = arith.addf %319, %330 : vector<8x128xf32>
    %332 = vector.broadcast %32 : f32 to vector<8x128xf32>
    %333 = arith.mulf %135, %332 : vector<8x128xf32>
    %334 = vector.broadcast %33 : f32 to vector<8x128xf32>
    %335 = arith.mulf %138, %334 : vector<8x128xf32>
    %336 = arith.addf %333, %335 : vector<8x128xf32>
    %337 = vector.broadcast %80 : f32 to vector<8x128xf32>
    %338 = arith.addf %336, %337 : vector<8x128xf32>
    %cst_85 = arith.constant 0.000000e+00 : f32
    %339 = vector.broadcast %cst_85 : f32 to vector<8x128xf32>
    %340 = arith.maximumf %338, %339 : vector<8x128xf32>
    %341 = vector.broadcast %112 : f32 to vector<8x128xf32>
    %342 = arith.mulf %340, %341 : vector<8x128xf32>
    %343 = arith.addf %331, %342 : vector<8x128xf32>
    %344 = vector.broadcast %34 : f32 to vector<8x128xf32>
    %345 = arith.mulf %135, %344 : vector<8x128xf32>
    %346 = vector.broadcast %35 : f32 to vector<8x128xf32>
    %347 = arith.mulf %138, %346 : vector<8x128xf32>
    %348 = arith.addf %345, %347 : vector<8x128xf32>
    %349 = vector.broadcast %81 : f32 to vector<8x128xf32>
    %350 = arith.addf %348, %349 : vector<8x128xf32>
    %cst_86 = arith.constant 0.000000e+00 : f32
    %351 = vector.broadcast %cst_86 : f32 to vector<8x128xf32>
    %352 = arith.maximumf %350, %351 : vector<8x128xf32>
    %353 = vector.broadcast %113 : f32 to vector<8x128xf32>
    %354 = arith.mulf %352, %353 : vector<8x128xf32>
    %355 = arith.addf %343, %354 : vector<8x128xf32>
    %356 = vector.broadcast %36 : f32 to vector<8x128xf32>
    %357 = arith.mulf %135, %356 : vector<8x128xf32>
    %358 = vector.broadcast %37 : f32 to vector<8x128xf32>
    %359 = arith.mulf %138, %358 : vector<8x128xf32>
    %360 = arith.addf %357, %359 : vector<8x128xf32>
    %361 = vector.broadcast %82 : f32 to vector<8x128xf32>
    %362 = arith.addf %360, %361 : vector<8x128xf32>
    %cst_87 = arith.constant 0.000000e+00 : f32
    %363 = vector.broadcast %cst_87 : f32 to vector<8x128xf32>
    %364 = arith.maximumf %362, %363 : vector<8x128xf32>
    %365 = vector.broadcast %114 : f32 to vector<8x128xf32>
    %366 = arith.mulf %364, %365 : vector<8x128xf32>
    %367 = arith.addf %355, %366 : vector<8x128xf32>
    %368 = vector.broadcast %38 : f32 to vector<8x128xf32>
    %369 = arith.mulf %135, %368 : vector<8x128xf32>
    %370 = vector.broadcast %39 : f32 to vector<8x128xf32>
    %371 = arith.mulf %138, %370 : vector<8x128xf32>
    %372 = arith.addf %369, %371 : vector<8x128xf32>
    %373 = vector.broadcast %83 : f32 to vector<8x128xf32>
    %374 = arith.addf %372, %373 : vector<8x128xf32>
    %cst_88 = arith.constant 0.000000e+00 : f32
    %375 = vector.broadcast %cst_88 : f32 to vector<8x128xf32>
    %376 = arith.maximumf %374, %375 : vector<8x128xf32>
    %377 = vector.broadcast %115 : f32 to vector<8x128xf32>
    %378 = arith.mulf %376, %377 : vector<8x128xf32>
    %379 = arith.addf %367, %378 : vector<8x128xf32>
    %380 = vector.broadcast %40 : f32 to vector<8x128xf32>
    %381 = arith.mulf %135, %380 : vector<8x128xf32>
    %382 = vector.broadcast %41 : f32 to vector<8x128xf32>
    %383 = arith.mulf %138, %382 : vector<8x128xf32>
    %384 = arith.addf %381, %383 : vector<8x128xf32>
    %385 = vector.broadcast %84 : f32 to vector<8x128xf32>
    %386 = arith.addf %384, %385 : vector<8x128xf32>
    %cst_89 = arith.constant 0.000000e+00 : f32
    %387 = vector.broadcast %cst_89 : f32 to vector<8x128xf32>
    %388 = arith.maximumf %386, %387 : vector<8x128xf32>
    %389 = vector.broadcast %116 : f32 to vector<8x128xf32>
    %390 = arith.mulf %388, %389 : vector<8x128xf32>
    %391 = arith.addf %379, %390 : vector<8x128xf32>
    %392 = vector.broadcast %42 : f32 to vector<8x128xf32>
    %393 = arith.mulf %135, %392 : vector<8x128xf32>
    %394 = vector.broadcast %43 : f32 to vector<8x128xf32>
    %395 = arith.mulf %138, %394 : vector<8x128xf32>
    %396 = arith.addf %393, %395 : vector<8x128xf32>
    %397 = vector.broadcast %85 : f32 to vector<8x128xf32>
    %398 = arith.addf %396, %397 : vector<8x128xf32>
    %cst_90 = arith.constant 0.000000e+00 : f32
    %399 = vector.broadcast %cst_90 : f32 to vector<8x128xf32>
    %400 = arith.maximumf %398, %399 : vector<8x128xf32>
    %401 = vector.broadcast %117 : f32 to vector<8x128xf32>
    %402 = arith.mulf %400, %401 : vector<8x128xf32>
    %403 = arith.addf %391, %402 : vector<8x128xf32>
    %404 = vector.broadcast %44 : f32 to vector<8x128xf32>
    %405 = arith.mulf %135, %404 : vector<8x128xf32>
    %406 = vector.broadcast %45 : f32 to vector<8x128xf32>
    %407 = arith.mulf %138, %406 : vector<8x128xf32>
    %408 = arith.addf %405, %407 : vector<8x128xf32>
    %409 = vector.broadcast %86 : f32 to vector<8x128xf32>
    %410 = arith.addf %408, %409 : vector<8x128xf32>
    %cst_91 = arith.constant 0.000000e+00 : f32
    %411 = vector.broadcast %cst_91 : f32 to vector<8x128xf32>
    %412 = arith.maximumf %410, %411 : vector<8x128xf32>
    %413 = vector.broadcast %118 : f32 to vector<8x128xf32>
    %414 = arith.mulf %412, %413 : vector<8x128xf32>
    %415 = arith.addf %403, %414 : vector<8x128xf32>
    %416 = vector.broadcast %46 : f32 to vector<8x128xf32>
    %417 = arith.mulf %135, %416 : vector<8x128xf32>
    %418 = vector.broadcast %47 : f32 to vector<8x128xf32>
    %419 = arith.mulf %138, %418 : vector<8x128xf32>
    %420 = arith.addf %417, %419 : vector<8x128xf32>
    %421 = vector.broadcast %87 : f32 to vector<8x128xf32>
    %422 = arith.addf %420, %421 : vector<8x128xf32>
    %cst_92 = arith.constant 0.000000e+00 : f32
    %423 = vector.broadcast %cst_92 : f32 to vector<8x128xf32>
    %424 = arith.maximumf %422, %423 : vector<8x128xf32>
    %425 = vector.broadcast %119 : f32 to vector<8x128xf32>
    %426 = arith.mulf %424, %425 : vector<8x128xf32>
    %427 = arith.addf %415, %426 : vector<8x128xf32>
    %428 = vector.broadcast %48 : f32 to vector<8x128xf32>
    %429 = arith.mulf %135, %428 : vector<8x128xf32>
    %430 = vector.broadcast %49 : f32 to vector<8x128xf32>
    %431 = arith.mulf %138, %430 : vector<8x128xf32>
    %432 = arith.addf %429, %431 : vector<8x128xf32>
    %433 = vector.broadcast %88 : f32 to vector<8x128xf32>
    %434 = arith.addf %432, %433 : vector<8x128xf32>
    %cst_93 = arith.constant 0.000000e+00 : f32
    %435 = vector.broadcast %cst_93 : f32 to vector<8x128xf32>
    %436 = arith.maximumf %434, %435 : vector<8x128xf32>
    %437 = vector.broadcast %120 : f32 to vector<8x128xf32>
    %438 = arith.mulf %436, %437 : vector<8x128xf32>
    %439 = arith.addf %427, %438 : vector<8x128xf32>
    %440 = vector.broadcast %50 : f32 to vector<8x128xf32>
    %441 = arith.mulf %135, %440 : vector<8x128xf32>
    %442 = vector.broadcast %51 : f32 to vector<8x128xf32>
    %443 = arith.mulf %138, %442 : vector<8x128xf32>
    %444 = arith.addf %441, %443 : vector<8x128xf32>
    %445 = vector.broadcast %89 : f32 to vector<8x128xf32>
    %446 = arith.addf %444, %445 : vector<8x128xf32>
    %cst_94 = arith.constant 0.000000e+00 : f32
    %447 = vector.broadcast %cst_94 : f32 to vector<8x128xf32>
    %448 = arith.maximumf %446, %447 : vector<8x128xf32>
    %449 = vector.broadcast %121 : f32 to vector<8x128xf32>
    %450 = arith.mulf %448, %449 : vector<8x128xf32>
    %451 = arith.addf %439, %450 : vector<8x128xf32>
    %452 = vector.broadcast %52 : f32 to vector<8x128xf32>
    %453 = arith.mulf %135, %452 : vector<8x128xf32>
    %454 = vector.broadcast %53 : f32 to vector<8x128xf32>
    %455 = arith.mulf %138, %454 : vector<8x128xf32>
    %456 = arith.addf %453, %455 : vector<8x128xf32>
    %457 = vector.broadcast %90 : f32 to vector<8x128xf32>
    %458 = arith.addf %456, %457 : vector<8x128xf32>
    %cst_95 = arith.constant 0.000000e+00 : f32
    %459 = vector.broadcast %cst_95 : f32 to vector<8x128xf32>
    %460 = arith.maximumf %458, %459 : vector<8x128xf32>
    %461 = vector.broadcast %122 : f32 to vector<8x128xf32>
    %462 = arith.mulf %460, %461 : vector<8x128xf32>
    %463 = arith.addf %451, %462 : vector<8x128xf32>
    %464 = vector.broadcast %54 : f32 to vector<8x128xf32>
    %465 = arith.mulf %135, %464 : vector<8x128xf32>
    %466 = vector.broadcast %55 : f32 to vector<8x128xf32>
    %467 = arith.mulf %138, %466 : vector<8x128xf32>
    %468 = arith.addf %465, %467 : vector<8x128xf32>
    %469 = vector.broadcast %91 : f32 to vector<8x128xf32>
    %470 = arith.addf %468, %469 : vector<8x128xf32>
    %cst_96 = arith.constant 0.000000e+00 : f32
    %471 = vector.broadcast %cst_96 : f32 to vector<8x128xf32>
    %472 = arith.maximumf %470, %471 : vector<8x128xf32>
    %473 = vector.broadcast %123 : f32 to vector<8x128xf32>
    %474 = arith.mulf %472, %473 : vector<8x128xf32>
    %475 = arith.addf %463, %474 : vector<8x128xf32>
    %476 = vector.broadcast %56 : f32 to vector<8x128xf32>
    %477 = arith.mulf %135, %476 : vector<8x128xf32>
    %478 = vector.broadcast %57 : f32 to vector<8x128xf32>
    %479 = arith.mulf %138, %478 : vector<8x128xf32>
    %480 = arith.addf %477, %479 : vector<8x128xf32>
    %481 = vector.broadcast %92 : f32 to vector<8x128xf32>
    %482 = arith.addf %480, %481 : vector<8x128xf32>
    %cst_97 = arith.constant 0.000000e+00 : f32
    %483 = vector.broadcast %cst_97 : f32 to vector<8x128xf32>
    %484 = arith.maximumf %482, %483 : vector<8x128xf32>
    %485 = vector.broadcast %124 : f32 to vector<8x128xf32>
    %486 = arith.mulf %484, %485 : vector<8x128xf32>
    %487 = arith.addf %475, %486 : vector<8x128xf32>
    %488 = vector.broadcast %58 : f32 to vector<8x128xf32>
    %489 = arith.mulf %135, %488 : vector<8x128xf32>
    %490 = vector.broadcast %59 : f32 to vector<8x128xf32>
    %491 = arith.mulf %138, %490 : vector<8x128xf32>
    %492 = arith.addf %489, %491 : vector<8x128xf32>
    %493 = vector.broadcast %93 : f32 to vector<8x128xf32>
    %494 = arith.addf %492, %493 : vector<8x128xf32>
    %cst_98 = arith.constant 0.000000e+00 : f32
    %495 = vector.broadcast %cst_98 : f32 to vector<8x128xf32>
    %496 = arith.maximumf %494, %495 : vector<8x128xf32>
    %497 = vector.broadcast %125 : f32 to vector<8x128xf32>
    %498 = arith.mulf %496, %497 : vector<8x128xf32>
    %499 = arith.addf %487, %498 : vector<8x128xf32>
    %500 = vector.broadcast %60 : f32 to vector<8x128xf32>
    %501 = arith.mulf %135, %500 : vector<8x128xf32>
    %502 = vector.broadcast %61 : f32 to vector<8x128xf32>
    %503 = arith.mulf %138, %502 : vector<8x128xf32>
    %504 = arith.addf %501, %503 : vector<8x128xf32>
    %505 = vector.broadcast %94 : f32 to vector<8x128xf32>
    %506 = arith.addf %504, %505 : vector<8x128xf32>
    %cst_99 = arith.constant 0.000000e+00 : f32
    %507 = vector.broadcast %cst_99 : f32 to vector<8x128xf32>
    %508 = arith.maximumf %506, %507 : vector<8x128xf32>
    %509 = vector.broadcast %126 : f32 to vector<8x128xf32>
    %510 = arith.mulf %508, %509 : vector<8x128xf32>
    %511 = arith.addf %499, %510 : vector<8x128xf32>
    %512 = vector.broadcast %62 : f32 to vector<8x128xf32>
    %513 = arith.mulf %135, %512 : vector<8x128xf32>
    %514 = vector.broadcast %63 : f32 to vector<8x128xf32>
    %515 = arith.mulf %138, %514 : vector<8x128xf32>
    %516 = arith.addf %513, %515 : vector<8x128xf32>
    %517 = vector.broadcast %95 : f32 to vector<8x128xf32>
    %518 = arith.addf %516, %517 : vector<8x128xf32>
    %cst_100 = arith.constant 0.000000e+00 : f32
    %519 = vector.broadcast %cst_100 : f32 to vector<8x128xf32>
    %520 = arith.maximumf %518, %519 : vector<8x128xf32>
    %521 = vector.broadcast %127 : f32 to vector<8x128xf32>
    %522 = arith.mulf %520, %521 : vector<8x128xf32>
    %523 = arith.addf %511, %522 : vector<8x128xf32>
    %524 = arith.index_cast %132 : i32 to index
    %c0_101 = arith.constant 0 : index
    %525 = vector.load %arg6[%524, %c0_101] : memref<8x128xf32, #tpu.memory_space<vmem>>, vector<8x128xf32>
    tpu.vector_store %arg6[%524, %c0_101], %523 {strides = array<i32>} : memref<8x128xf32, #tpu.memory_space<vmem>>, vector<8x128xf32>,
    %c1_i32_102 = arith.constant 1 : i32
    return
  }
  func.func @transform_0(%arg0: i32) -> (i32, i32, i32) {
    %c0_i32 = arith.constant 0 : i32
    %c0_i32_0 = arith.constant 0 : i32
    %c0_i32_1 = arith.constant 0 : i32
    return %c0_i32, %arg0, %c0_i32_0 : i32, i32, i32
  }
  func.func @transform_1(%arg0: i32) -> i32 {
    %c0_i32 = arith.constant 0 : i32
    %c0_i32_0 = arith.constant 0 : i32
    return %c0_i32 : i32
  }
  func.func @transform_2(%arg0: i32) -> i32 {
    %c0_i32 = arith.constant 0 : i32
    %c0_i32_0 = arith.constant 0 : i32
    return %c0_i32 : i32
  }
  func.func @transform_3(%arg0: i32) -> i32 {
    %c0_i32 = arith.constant 0 : i32
    %c0_i32_0 = arith.constant 0 : i32
    return %c0_i32 : i32
  }
  func.func @transform_4(%arg0: i32) -> i32 {
    %c0_i32 = arith.constant 0 : i32
    %c0_i32_0 = arith.constant 0 : i32
    return %c0_i32 : i32
  }
  func.func @transform_5(%arg0: i32) -> (i32, i32) {
    %c0_i32 = arith.constant 0 : i32
    %c0_i32_0 = arith.constant 0 : i32
    return %arg0, %c0_i32 : i32, i32
  }
}

</mosaic_0001>

<llo_original>
// kernel: tpu_custom_call.1
$region0: #{tpu_custom_call.1}
  #allocation0 [shape = 'u32[]', space=smem, size = 0x4, offset = 0x4, fixed_abs, tag = 'smem constant byte address 0x4 - core index']
  #allocation1 [shape = 'u32[144,128]{1,0:T(1,128)}', space=vmem, size = 0x12000, scoped, tag = 'internal scratch']
  #allocation2 [shape = 'f32[1]{0:T(128)S(6)}', space=smem, size = 0x200, scoped, tag = 'scoped memory for tpu_custom_call.1']
  %s0 = inlined_call_operand.hbm [shape: f32[2,8,128], index: 0, kind: input, shape index: {}]
  %s1 = inlined_call_operand.vmem [shape: f32[64], index: 1, kind: input, shape index: {}]
  %s2 = inlined_call_operand.vmem [shape: f32[32], index: 2, kind: input, shape index: {}]
  %s3 = inlined_call_operand.vmem [shape: f32[32], index: 3, kind: input, shape index: {}]
  %s4 = inlined_call_operand.<no memory space> [shape: f32[1], index: 4, kind: input, shape index: {}]
  %s5 = inlined_call_operand.hbm [shape: f32[8,128], index: 5, kind: output, shape index: {}]
  %s6 = sld [smem:[#allocation0]]
  $region46: #{tpu_custom_call.1} parent=0
    _
  %s8 = ssub.s32 1, %s6
  %s9 = scalar_select 0, %s8, %s6
  %10 = sst [smem:[#allocation2]] %s4
  $region1: #{tpu_custom_call.1} parent=0
    #allocation3 [shape = 'u8[8192]{0}', space=vmem, size = 0x2000, scoped, tag = 'input window, operand 0, single buffered']
    #allocation4 [shape = 's32[1]{0}', space=sflag, size = 0x4, scoped, tag = 'scoped memory for tpu_custom_call.1']
    #allocation5 [shape = 's32[1]{0}', space=sflag, size = 0x4, scoped, tag = 'scoped memory for tpu_custom_call.1']
    #allocation6 [shape = 's32[1]{0}', space=sflag, size = 0x4, scoped, tag = 'scoped memory for tpu_custom_call.1']
    #allocation7 [shape = 'u8[512]{0}', space=smem, size = 0x200, scoped, tag = 'input window, operand 1, single buffered']
    #allocation8 [shape = 'u8[512]{0}', space=smem, size = 0x200, scoped, tag = 'input window, operand 2, single buffered']
    #allocation9 [shape = 's32[1]{0}', space=sflag, size = 0x4, scoped, tag = 'scoped memory for tpu_custom_call.1']
    #allocation10 [shape = 'u8[512]{0}', space=smem, size = 0x200, scoped, tag = 'input window, operand 3, single buffered']
    #allocation11 [shape = 'u8[4096]{0}', space=vmem, size = 0x1000, scoped, tag = 'output window, operand 0, single buffered']
    %11 = vsyncpa [#allocation4], 0
    %12 = vsyncpa [#allocation6], 0
    %13 = vsyncpa [#allocation9], 0
    %14 = vsyncpa [#allocation5], 0
    // Predicated region
    $region2: #{tpu_custom_call.1} parent=1 // pred_check
      _
    $region3: #{tpu_custom_call.1} parent=1 // pred_check_branch
      %16 = sbr.rel (0) target = $region5
    $region4: #{tpu_custom_call.1} parent=1 // pred_region
      %s18 = ssub.s32 256, 256
      %19 = vsyncadd [#allocation4], %s18
      %s20 = sshll.u32 [#allocation3], 4
      %s21 = int_to_ptr.vmem [resolvable:$true] %s20
      %26 = dma.hbm_to_vmem [thread:$0]  %s0, 256, %s21, [#allocation4], 128, 128, 8
    $region5: #{tpu_custom_call.1} parent=1 // pred_fallthru
      _
    // Predicated region
    $region6: #{tpu_custom_call.1} parent=1 // pred_check
      _
    $region7: #{tpu_custom_call.1} parent=1 // pred_check_branch
      %28 = sbr.rel (0) target = $region9
    $region8: #{tpu_custom_call.1} parent=1 // pred_region
      %s30 = ssub.s32 16, 16
      %31 = vsyncadd [#allocation6], %s30
      %s33 = sshll.u32 %s1, 4
      %s34 = int_to_ptr.vmem [resolvable:$true] %s33
      %36 = dma.vmem_to_smem %s34, 16, [#allocation7], [#allocation6]
    $region9: #{tpu_custom_call.1} parent=1 // pred_fallthru
      _
    // Predicated region
    $region10: #{tpu_custom_call.1} parent=1 // pred_check
      _
    $region11: #{tpu_custom_call.1} parent=1 // pred_check_branch
      %38 = sbr.rel (0) target = $region13
    $region12: #{tpu_custom_call.1} parent=1 // pred_region
      %s40 = ssub.s32 16, 16
      %41 = vsyncadd [#allocation9], %s40
      %s43 = sshll.u32 %s2, 4
      %s44 = int_to_ptr.vmem [resolvable:$true] %s43
      %46 = dma.vmem_to_smem %s44, 16, [#allocation8], [#allocation9]
    $region13: #{tpu_custom_call.1} parent=1 // pred_fallthru
      _
    // Predicated region
    $region14: #{tpu_custom_call.1} parent=1 // pred_check
      _
    $region15: #{tpu_custom_call.1} parent=1 // pred_check_branch
      %48 = sbr.rel (0) target = $region17
    $region16: #{tpu_custom_call.1} parent=1 // pred_region
      %s50 = ssub.s32 16, 16
      %51 = vsyncadd [#allocation9], %s50
      %s53 = sshll.u32 %s3, 4
      %s54 = int_to_ptr.vmem [resolvable:$true] %s53
      %56 = dma.vmem_to_smem %s54, 16, [#allocation10], [#allocation9]
    $region17: #{tpu_custom_call.1} parent=1 // pred_fallthru
      _
    // Predicated region
    $region18: #{tpu_custom_call.1} parent=1 // pred_check
      _
    $region19: #{tpu_custom_call.1} parent=1 // pred_check_branch
      %58 = sbr.rel (0) target = $region21
    $region20: #{tpu_custom_call.1} parent=1 // pred_region
      _
    $region21: #{tpu_custom_call.1} parent=1 // pred_fallthru
      _
    // Predicated region
    $region22: #{tpu_custom_call.1} parent=1 // pred_check
      _
    $region23: #{tpu_custom_call.1} parent=1 // pred_check_branch
      %60 = sbr.rel (0) target = $region25
    $region24: #{tpu_custom_call.1} parent=1 // pred_region
      %61 = dma.done [#allocation4], 256
    $region25: #{tpu_custom_call.1} parent=1 // pred_fallthru
      _
    // Predicated region
    $region26: #{tpu_custom_call.1} parent=1 // pred_check
      _
    $region27: #{tpu_custom_call.1} parent=1 // pred_check_branch
      %63 = sbr.rel (0) target = $region29
    $region28: #{tpu_custom_call.1} parent=1 // pred_region
      %64 = dma.done [#allocation6], 16
    $region29: #{tpu_custom_call.1} parent=1 // pred_fallthru
      _
    // Predicated region
    $region30: #{tpu_custom_call.1} parent=1 // pred_check
      _
    $region31: #{tpu_custom_call.1} parent=1 // pred_check_branch
      %66 = sbr.rel (0) target = $region33
    $region32: #{tpu_custom_call.1} parent=1 // pred_region
      %67 = dma.done [#allocation9], 16
    $region33: #{tpu_custom_call.1} parent=1 // pred_fallthru
      _
    // Predicated region
    $region34: #{tpu_custom_call.1} parent=1 // pred_check
      _
    $region35: #{tpu_custom_call.1} parent=1 // pred_check_branch
      %69 = sbr.rel (0) target = $region37
    $region36: #{tpu_custom_call.1} parent=1 // pred_region
      %70 = dma.done [#allocation9], 16
    $region37: #{tpu_custom_call.1} parent=1 // pred_fallthru
      _
    %71 = sfence
    %s72 = sld [smem:[#allocation7]]
    %s73 = sld [smem:[#allocation7 + $0x1]]
    %s74 = sld [smem:[#allocation7 + $0x2]]
    %s75 = sld [smem:[#allocation7 + $0x3]]
    %s76 = sld [smem:[#allocation7 + $0x4]]
    %s77 = sld [smem:[#allocation7 + $0x5]]
    %s78 = sld [smem:[#allocation7 + $0x6]]
    %s79 = sld [smem:[#allocation7 + $0x7]]
    %s80 = sld [smem:[#allocation7 + $0x8]]
    %s81 = sld [smem:[#allocation7 + $0x9]]
    %s82 = sld [smem:[#allocation7 + $0xa]]
    %s83 = sld [smem:[#allocation7 + $0xb]]
    %s84 = sld [smem:[#allocation7 + $0xc]]
    %s85 = sld [smem:[#allocation7 + $0xd]]
    %s86 = sld [smem:[#allocation7 + $0xe]]
    %s87 = sld [smem:[#allocation7 + $0xf]]
    %s88 = sld [smem:[#allocation7 + $0x10]]
    %s89 = sld [smem:[#allocation7 + $0x11]]
    %s90 = sld [smem:[#allocation7 + $0x12]]
    %s91 = sld [smem:[#allocation7 + $0x13]]
    %s92 = sld [smem:[#allocation7 + $0x14]]
    %s93 = sld [smem:[#allocation7 + $0x15]]
    %s94 = sld [smem:[#allocation7 + $0x16]]
    %s95 = sld [smem:[#allocation7 + $0x17]]
    %s96 = sld [smem:[#allocation7 + $0x18]]
    %s97 = sld [smem:[#allocation7 + $0x19]]
    %s98 = sld [smem:[#allocation7 + $0x1a]]
    %s99 = sld [smem:[#allocation7 + $0x1b]]
    %s100 = sld [smem:[#allocation7 + $0x1c]]
    %s101 = sld [smem:[#allocation7 + $0x1d]]
    %s102 = sld [smem:[#allocation7 + $0x1e]]
    %s103 = sld [smem:[#allocation7 + $0x1f]]
    %s104 = sld [smem:[#allocation7 + $0x20]]
    %s105 = sld [smem:[#allocation7 + $0x21]]
    %s106 = sld [smem:[#allocation7 + $0x22]]
    %s107 = sld [smem:[#allocation7 + $0x23]]
    %s108 = sld [smem:[#allocation7 + $0x24]]
    %s109 = sld [smem:[#allocation7 + $0x25]]
    %s110 = sld [smem:[#allocation7 + $0x26]]
    %s111 = sld [smem:[#allocation7 + $0x27]]
    %s112 = sld [smem:[#allocation7 + $0x28]]
    %s113 = sld [smem:[#allocation7 + $0x29]]
    %s114 = sld [smem:[#allocation7 + $0x2a]]
    %s115 = sld [smem:[#allocation7 + $0x2b]]
    %s116 = sld [smem:[#allocation7 + $0x2c]]
    %s117 = sld [smem:[#allocation7 + $0x2d]]
    %s118 = sld [smem:[#allocation7 + $0x2e]]
    %s119 = sld [smem:[#allocation7 + $0x2f]]
    %s120 = sld [smem:[#allocation7 + $0x30]]
    %s121 = sld [smem:[#allocation7 + $0x31]]
    %s122 = sld [smem:[#allocation7 + $0x32]]
    %s123 = sld [smem:[#allocation7 + $0x33]]
    %s124 = sld [smem:[#allocation7 + $0x34]]
    %s125 = sld [smem:[#allocation7 + $0x35]]
    %s126 = sld [smem:[#allocation7 + $0x36]]
    %s127 = sld [smem:[#allocation7 + $0x37]]
    %s128 = sld [smem:[#allocation7 + $0x38]]
    %s129 = sld [smem:[#allocation7 + $0x39]]
    %s130 = sld [smem:[#allocation7 + $0x3a]]
    %s131 = sld [smem:[#allocation7 + $0x3b]]
    %s132 = sld [smem:[#allocation7 + $0x3c]]
    %s133 = sld [smem:[#allocation7 + $0x3d]]
    %s134 = sld [smem:[#allocation7 + $0x3e]]
    %s135 = sld [smem:[#allocation7 + $0x3f]]
    %s136 = sld [smem:[#allocation8]]
    %s137 = sld [smem:[#allocation8 + $0x1]]
    %s138 = sld [smem:[#allocation8 + $0x2]]
    %s139 = sld [smem:[#allocation8 + $0x3]]
    %s140 = sld [smem:[#allocation8 + $0x4]]
    %s141 = sld [smem:[#allocation8 + $0x5]]
    %s142 = sld [smem:[#allocation8 + $0x6]]
    %s143 = sld [smem:[#allocation8 + $0x7]]
    %s144 = sld [smem:[#allocation8 + $0x8]]
    %s145 = sld [smem:[#allocation8 + $0x9]]
    %s146 = sld [smem:[#allocation8 + $0xa]]
    %s147 = sld [smem:[#allocation8 + $0xb]]
    %s148 = sld [smem:[#allocation8 + $0xc]]
    %s149 = sld [smem:[#allocation8 + $0xd]]
    %s150 = sld [smem:[#allocation8 + $0xe]]
    %s151 = sld [smem:[#allocation8 + $0xf]]
    %s152 = sld [smem:[#allocation8 + $0x10]]
    %s153 = sld [smem:[#allocation8 + $0x11]]
    %s154 = sld [smem:[#allocation8 + $0x12]]
    %s155 = sld [smem:[#allocation8 + $0x13]]
    %s156 = sld [smem:[#allocation8 + $0x14]]
    %s157 = sld [smem:[#allocation8 + $0x15]]
    %s158 = sld [smem:[#allocation8 + $0x16]]
    %s159 = sld [smem:[#allocation8 + $0x17]]
    %s160 = sld [smem:[#allocation8 + $0x18]]
    %s161 = sld [smem:[#allocation8 + $0x19]]
    %s162 = sld [smem:[#allocation8 + $0x1a]]
    %s163 = sld [smem:[#allocation8 + $0x1b]]
    %s164 = sld [smem:[#allocation8 + $0x1c]]
    %s165 = sld [smem:[#allocation8 + $0x1d]]
    %s166 = sld [smem:[#allocation8 + $0x1e]]
    %s167 = sld [smem:[#allocation8 + $0x1f]]
    %s168 = sld [smem:[#allocation10]]
    %s169 = sld [smem:[#allocation10 + $0x1]]
    %s170 = sld [smem:[#allocation10 + $0x2]]
    %s171 = sld [smem:[#allocation10 + $0x3]]
    %s172 = sld [smem:[#allocation10 + $0x4]]
    %s173 = sld [smem:[#allocation10 + $0x5]]
    %s174 = sld [smem:[#allocation10 + $0x6]]
    %s175 = sld [smem:[#allocation10 + $0x7]]
    %s176 = sld [smem:[#allocation10 + $0x8]]
    %s177 = sld [smem:[#allocation10 + $0x9]]
    %s178 = sld [smem:[#allocation10 + $0xa]]
    %s179 = sld [smem:[#allocation10 + $0xb]]
    %s180 = sld [smem:[#allocation10 + $0xc]]
    %s181 = sld [smem:[#allocation10 + $0xd]]
    %s182 = sld [smem:[#allocation10 + $0xe]]
    %s183 = sld [smem:[#allocation10 + $0xf]]
    %s184 = sld [smem:[#allocation10 + $0x10]]
    %s185 = sld [smem:[#allocation10 + $0x11]]
    %s186 = sld [smem:[#allocation10 + $0x12]]
    %s187 = sld [smem:[#allocation10 + $0x13]]
    %s188 = sld [smem:[#allocation10 + $0x14]]
    %s189 = sld [smem:[#allocation10 + $0x15]]
    %s190 = sld [smem:[#allocation10 + $0x16]]
    %s191 = sld [smem:[#allocation10 + $0x17]]
    %s192 = sld [smem:[#allocation10 + $0x18]]
    %s193 = sld [smem:[#allocation10 + $0x19]]
    %s194 = sld [smem:[#allocation10 + $0x1a]]
    %s195 = sld [smem:[#allocation10 + $0x1b]]
    %s196 = sld [smem:[#allocation10 + $0x1c]]
    %s197 = sld [smem:[#allocation10 + $0x1d]]
    %s198 = sld [smem:[#allocation10 + $0x1e]]
    %s199 = sld [smem:[#allocation10 + $0x1f]]
    %s200 = sld [smem:[#allocation2]]
    %v201 = vld [vmem:[#allocation3] sm:$0xff]
    %s202 = sadd.s32 0, 8
    %s203 = scalar_lea.vmem [#allocation3], %s202
    %v204 = vld [vmem:[%s203] sm:$0xff]
    %v205 = vstv %s200
    %v206 = vstv %s72
    %v207 = vmul.f32 %v201, %v206
    %v208 = vstv %s73
    %v209 = vmul.f32 %v204, %v208
    %v210 = vadd.f32 %v207, %v209
    %v211 = vstv %s136
    %v212 = vadd.f32 %v210, %v211
    %v213 = vmax.f32 %v212, 0.0
    %v214 = vstv %s168
    %v215 = vmul.f32 %v213, %v214
    %v216 = vadd.f32 %v205, %v215
    %v217 = vstv %s74
    %v218 = vmul.f32 %v201, %v217
    %v219 = vstv %s75
    %v220 = vmul.f32 %v204, %v219
    %v221 = vadd.f32 %v218, %v220
    %v222 = vstv %s137
    %v223 = vadd.f32 %v221, %v222
    %v224 = vmax.f32 %v223, 0.0
    %v225 = vstv %s169
    %v226 = vmul.f32 %v224, %v225
    %v227 = vadd.f32 %v216, %v226
    %v228 = vstv %s76
    %v229 = vmul.f32 %v201, %v228
    %v230 = vstv %s77
    %v231 = vmul.f32 %v204, %v230
    %v232 = vadd.f32 %v229, %v231
    %v233 = vstv %s138
    %v234 = vadd.f32 %v232, %v233
    %v235 = vmax.f32 %v234, 0.0
    %v236 = vstv %s170
    %v237 = vmul.f32 %v235, %v236
    %v238 = vadd.f32 %v227, %v237
    %v239 = vstv %s78
    %v240 = vmul.f32 %v201, %v239
    %v241 = vstv %s79
    %v242 = vmul.f32 %v204, %v241
    %v243 = vadd.f32 %v240, %v242
    %v244 = vstv %s139
    %v245 = vadd.f32 %v243, %v244
    %v246 = vmax.f32 %v245, 0.0
    %v247 = vstv %s171
    %v248 = vmul.f32 %v246, %v247
    %v249 = vadd.f32 %v238, %v248
    %v250 = vstv %s80
    %v251 = vmul.f32 %v201, %v250
    %v252 = vstv %s81
    %v253 = vmul.f32 %v204, %v252
    %v254 = vadd.f32 %v251, %v253
    %v255 = vstv %s140
    %v256 = vadd.f32 %v254, %v255
    %v257 = vmax.f32 %v256, 0.0
    %v258 = vstv %s172
    %v259 = vmul.f32 %v257, %v258
    %v260 = vadd.f32 %v249, %v259
    %v261 = vstv %s82
    %v262 = vmul.f32 %v201, %v261
    %v263 = vstv %s83
    %v264 = vmul.f32 %v204, %v263
    %v265 = vadd.f32 %v262, %v264
    %v266 = vstv %s141
    %v267 = vadd.f32 %v265, %v266
    %v268 = vmax.f32 %v267, 0.0
    %v269 = vstv %s173
    %v270 = vmul.f32 %v268, %v269
    %v271 = vadd.f32 %v260, %v270
    %v272 = vstv %s84
    %v273 = vmul.f32 %v201, %v272
    %v274 = vstv %s85
    %v275 = vmul.f32 %v204, %v274
    %v276 = vadd.f32 %v273, %v275
    %v277 = vstv %s142
    %v278 = vadd.f32 %v276, %v277
    %v279 = vmax.f32 %v278, 0.0
    %v280 = vstv %s174
    %v281 = vmul.f32 %v279, %v280
    %v282 = vadd.f32 %v271, %v281
    %v283 = vstv %s86
    %v284 = vmul.f32 %v201, %v283
    %v285 = vstv %s87
    %v286 = vmul.f32 %v204, %v285
    %v287 = vadd.f32 %v284, %v286
    %v288 = vstv %s143
    %v289 = vadd.f32 %v287, %v288
    %v290 = vmax.f32 %v289, 0.0
    %v291 = vstv %s175
    %v292 = vmul.f32 %v290, %v291
    %v293 = vadd.f32 %v282, %v292
    %v294 = vstv %s88
    %v295 = vmul.f32 %v201, %v294
    %v296 = vstv %s89
    %v297 = vmul.f32 %v204, %v296
    %v298 = vadd.f32 %v295, %v297
    %v299 = vstv %s144
    %v300 = vadd.f32 %v298, %v299
    %v301 = vmax.f32 %v300, 0.0
    %v302 = vstv %s176
    %v303 = vmul.f32 %v301, %v302
    %v304 = vadd.f32 %v293, %v303
    %v305 = vstv %s90
    %v306 = vmul.f32 %v201, %v305
    %v307 = vstv %s91
    %v308 = vmul.f32 %v204, %v307
    %v309 = vadd.f32 %v306, %v308
    %v310 = vstv %s145
    %v311 = vadd.f32 %v309, %v310
    %v312 = vmax.f32 %v311, 0.0
    %v313 = vstv %s177
    %v314 = vmul.f32 %v312, %v313
    %v315 = vadd.f32 %v304, %v314
    %v316 = vstv %s92
    %v317 = vmul.f32 %v201, %v316
    %v318 = vstv %s93
    %v319 = vmul.f32 %v204, %v318
    %v320 = vadd.f32 %v317, %v319
    %v321 = vstv %s146
    %v322 = vadd.f32 %v320, %v321
    %v323 = vmax.f32 %v322, 0.0
    %v324 = vstv %s178
    %v325 = vmul.f32 %v323, %v324
    %v326 = vadd.f32 %v315, %v325
    %v327 = vstv %s94
    %v328 = vmul.f32 %v201, %v327
    %v329 = vstv %s95
    %v330 = vmul.f32 %v204, %v329
    %v331 = vadd.f32 %v328, %v330
    %v332 = vstv %s147
    %v333 = vadd.f32 %v331, %v332
    %v334 = vmax.f32 %v333, 0.0
    %v335 = vstv %s179
    %v336 = vmul.f32 %v334, %v335
    %v337 = vadd.f32 %v326, %v336
    %v338 = vstv %s96
    %v339 = vmul.f32 %v201, %v338
    %v340 = vstv %s97
    %v341 = vmul.f32 %v204, %v340
    %v342 = vadd.f32 %v339, %v341
    %v343 = vstv %s148
    %v344 = vadd.f32 %v342, %v343
    %v345 = vmax.f32 %v344, 0.0
    %v346 = vstv %s180
    %v347 = vmul.f32 %v345, %v346
    %v348 = vadd.f32 %v337, %v347
    %v349 = vstv %s98
    %v350 = vmul.f32 %v201, %v349
    %v351 = vstv %s99
    %v352 = vmul.f32 %v204, %v351
    %v353 = vadd.f32 %v350, %v352
    %v354 = vstv %s149
    %v355 = vadd.f32 %v353, %v354
    %v356 = vmax.f32 %v355, 0.0
    %v357 = vstv %s181
    %v358 = vmul.f32 %v356, %v357
    %v359 = vadd.f32 %v348, %v358
    %v360 = vstv %s100
    %v361 = vmul.f32 %v201, %v360
    %v362 = vstv %s101
    %v363 = vmul.f32 %v204, %v362
    %v364 = vadd.f32 %v361, %v363
    %v365 = vstv %s150
    %v366 = vadd.f32 %v364, %v365
    %v367 = vmax.f32 %v366, 0.0
    %v368 = vstv %s182
    %v369 = vmul.f32 %v367, %v368
    %v370 = vadd.f32 %v359, %v369
    %v371 = vstv %s102
    %v372 = vmul.f32 %v201, %v371
    %v373 = vstv %s103
    %v374 = vmul.f32 %v204, %v373
    %v375 = vadd.f32 %v372, %v374
    %v376 = vstv %s151
    %v377 = vadd.f32 %v375, %v376
    %v378 = vmax.f32 %v377, 0.0
    %v379 = vstv %s183
    %v380 = vmul.f32 %v378, %v379
    %v381 = vadd.f32 %v370, %v380
    %v382 = vstv %s104
    %v383 = vmul.f32 %v201, %v382
    %v384 = vstv %s105
    %v385 = vmul.f32 %v204, %v384
    %v386 = vadd.f32 %v383, %v385
    %v387 = vstv %s152
    %v388 = vadd.f32 %v386, %v387
    %v389 = vmax.f32 %v388, 0.0
    %v390 = vstv %s184
    %v391 = vmul.f32 %v389, %v390
    %v392 = vadd.f32 %v381, %v391
    %v393 = vstv %s106
    %v394 = vmul.f32 %v201, %v393
    %v395 = vstv %s107
    %v396 = vmul.f32 %v204, %v395
    %v397 = vadd.f32 %v394, %v396
    %v398 = vstv %s153
    %v399 = vadd.f32 %v397, %v398
    %v400 = vmax.f32 %v399, 0.0
    %v401 = vstv %s185
    %v402 = vmul.f32 %v400, %v401
    %v403 = vadd.f32 %v392, %v402
    %v404 = vstv %s108
    %v405 = vmul.f32 %v201, %v404
    %v406 = vstv %s109
    %v407 = vmul.f32 %v204, %v406
    %v408 = vadd.f32 %v405, %v407
    %v409 = vstv %s154
    %v410 = vadd.f32 %v408, %v409
    %v411 = vmax.f32 %v410, 0.0
    %v412 = vstv %s186
    %v413 = vmul.f32 %v411, %v412
    %v414 = vadd.f32 %v403, %v413
    %v415 = vstv %s110
    %v416 = vmul.f32 %v201, %v415
    %v417 = vstv %s111
    %v418 = vmul.f32 %v204, %v417
    %v419 = vadd.f32 %v416, %v418
    %v420 = vstv %s155
    %v421 = vadd.f32 %v419, %v420
    %v422 = vmax.f32 %v421, 0.0
    %v423 = vstv %s187
    %v424 = vmul.f32 %v422, %v423
    %v425 = vadd.f32 %v414, %v424
    %v426 = vstv %s112
    %v427 = vmul.f32 %v201, %v426
    %v428 = vstv %s113
    %v429 = vmul.f32 %v204, %v428
    %v430 = vadd.f32 %v427, %v429
    %v431 = vstv %s156
    %v432 = vadd.f32 %v430, %v431
    %v433 = vmax.f32 %v432, 0.0
    %v434 = vstv %s188
    %v435 = vmul.f32 %v433, %v434
    %v436 = vadd.f32 %v425, %v435
    %v437 = vstv %s114
    %v438 = vmul.f32 %v201, %v437
    %v439 = vstv %s115
    %v440 = vmul.f32 %v204, %v439
    %v441 = vadd.f32 %v438, %v440
    %v442 = vstv %s157
    %v443 = vadd.f32 %v441, %v442
    %v444 = vmax.f32 %v443, 0.0
    %v445 = vstv %s189
    %v446 = vmul.f32 %v444, %v445
    %v447 = vadd.f32 %v436, %v446
    %v448 = vstv %s116
    %v449 = vmul.f32 %v201, %v448
    %v450 = vstv %s117
    %v451 = vmul.f32 %v204, %v450
    %v452 = vadd.f32 %v449, %v451
    %v453 = vstv %s158
    %v454 = vadd.f32 %v452, %v453
    %v455 = vmax.f32 %v454, 0.0
    %v456 = vstv %s190
    %v457 = vmul.f32 %v455, %v456
    %v458 = vadd.f32 %v447, %v457
    %v459 = vstv %s118
    %v460 = vmul.f32 %v201, %v459
    %v461 = vstv %s119
    %v462 = vmul.f32 %v204, %v461
    %v463 = vadd.f32 %v460, %v462
    %v464 = vstv %s159
    %v465 = vadd.f32 %v463, %v464
    %v466 = vmax.f32 %v465, 0.0
    %v467 = vstv %s191
    %v468 = vmul.f32 %v466, %v467
    %v469 = vadd.f32 %v458, %v468
    %v470 = vstv %s120
    %v471 = vmul.f32 %v201, %v470
    %v472 = vstv %s121
    %v473 = vmul.f32 %v204, %v472
    %v474 = vadd.f32 %v471, %v473
    %v475 = vstv %s160
    %v476 = vadd.f32 %v474, %v475
    %v477 = vmax.f32 %v476, 0.0
    %v478 = vstv %s192
    %v479 = vmul.f32 %v477, %v478
    %v480 = vadd.f32 %v469, %v479
    %v481 = vstv %s122
    %v482 = vmul.f32 %v201, %v481
    %v483 = vstv %s123
    %v484 = vmul.f32 %v204, %v483
    %v485 = vadd.f32 %v482, %v484
    %v486 = vstv %s161
    %v487 = vadd.f32 %v485, %v486
    %v488 = vmax.f32 %v487, 0.0
    %v489 = vstv %s193
    %v490 = vmul.f32 %v488, %v489
    %v491 = vadd.f32 %v480, %v490
    %v492 = vstv %s124
    %v493 = vmul.f32 %v201, %v492
    %v494 = vstv %s125
    %v495 = vmul.f32 %v204, %v494
    %v496 = vadd.f32 %v493, %v495
    %v497 = vstv %s162
    %v498 = vadd.f32 %v496, %v497
    %v499 = vmax.f32 %v498, 0.0
    %v500 = vstv %s194
    %v501 = vmul.f32 %v499, %v500
    %v502 = vadd.f32 %v491, %v501
    %v503 = vstv %s126
    %v504 = vmul.f32 %v201, %v503
    %v505 = vstv %s127
    %v506 = vmul.f32 %v204, %v505
    %v507 = vadd.f32 %v504, %v506
    %v508 = vstv %s163
    %v509 = vadd.f32 %v507, %v508
    %v510 = vmax.f32 %v509, 0.0
    %v511 = vstv %s195
    %v512 = vmul.f32 %v510, %v511
    %v513 = vadd.f32 %v502, %v512
    %v514 = vstv %s128
    %v515 = vmul.f32 %v201, %v514
    %v516 = vstv %s129
    %v517 = vmul.f32 %v204, %v516
    %v518 = vadd.f32 %v515, %v517
    %v519 = vstv %s164
    %v520 = vadd.f32 %v518, %v519
    %v521 = vmax.f32 %v520, 0.0
    %v522 = vstv %s196
    %v523 = vmul.f32 %v521, %v522
    %v524 = vadd.f32 %v513, %v523
    %v525 = vstv %s130
    %v526 = vmul.f32 %v201, %v525
    %v527 = vstv %s131
    %v528 = vmul.f32 %v204, %v527
    %v529 = vadd.f32 %v526, %v528
    %v530 = vstv %s165
    %v531 = vadd.f32 %v529, %v530
    %v532 = vmax.f32 %v531, 0.0
    %v533 = vstv %s197
    %v534 = vmul.f32 %v532, %v533
    %v535 = vadd.f32 %v524, %v534
    %v536 = vstv %s132
    %v537 = vmul.f32 %v201, %v536
    %v538 = vstv %s133
    %v539 = vmul.f32 %v204, %v538
    %v540 = vadd.f32 %v537, %v539
    %v541 = vstv %s166
    %v542 = vadd.f32 %v540, %v541
    %v543 = vmax.f32 %v542, 0.0
    %v544 = vstv %s198
    %v545 = vmul.f32 %v543, %v544
    %v546 = vadd.f32 %v535, %v545
    %v547 = vstv %s134
    %v548 = vmul.f32 %v201, %v547
    %v549 = vstv %s135
    %v550 = vmul.f32 %v204, %v549
    %v551 = vadd.f32 %v548, %v550
    %v552 = vstv %s167
    %v553 = vadd.f32 %v551, %v552
    %v554 = vmax.f32 %v553, 0.0
    %v555 = vstv %s199
    %v556 = vmul.f32 %v554, %v555
    %v557 = vadd.f32 %v546, %v556
    %558 = vst [vmem:[#allocation11] sm:$0xff] %v557
    // Predicated region
    $region38: #{tpu_custom_call.1} parent=1 // pred_check
      _
    $region39: #{tpu_custom_call.1} parent=1 // pred_check_branch
      %560 = sbr.rel (0) target = $region41
    $region40: #{tpu_custom_call.1} parent=1 // pred_region
      %s562 = ssub.s32 128, 128
      %563 = vsyncadd [#allocation5], %s562
      %s565 = sshll.u32 [#allocation11], 4
      %s566 = int_to_ptr.vmem [resolvable:$true] %s565
      %568 = dma.vmem_to_hbm [thread:$0]  %s566, 128, %s5, [#allocation5]
    $region41: #{tpu_custom_call.1} parent=1 // pred_fallthru
      _
    // Predicated region
    $region42: #{tpu_custom_call.1} parent=1 // pred_check
      _
    $region43: #{tpu_custom_call.1} parent=1 // pred_check_branch
      %570 = sbr.rel (0) target = $region45
    $region44: #{tpu_custom_call.1} parent=1 // pred_region
      %571 = dma.done [#allocation5], 128
    $region45: #{tpu_custom_call.1} parent=1 // pred_fallthru
      _
    %572 = vsyncpa [#allocation4], 1
    %573 = vsyncpa [#allocation5], 1
    %574 = vsyncpa [#allocation6], 1
    %575 = vsyncpa [#allocation9], 1

</llo_original>
